<compile_context>
chip_gen: v5e
topology: v5e:2x2
jax: 0.10.0
libtpu: 0.0.40
codegen_flags: <defaults>
</compile_context>

<pallas_src>
import functools

import jax
import jax.numpy as jnp
from jax.experimental import pallas as pl
from jax.experimental.pallas import tpu as pltpu


def _round_up(x, m):
    return ((x + m - 1) // m) * m


def _merge_kernel(ne_ref, s1_ref, s2_ref, w_ref, wg_ref, b_ref, bg_ref,
                  o_ref, x_ref, *, emb, hid):
    # ne_ref: (TB, E)   s1_ref/s2_ref: (TB, H)
    # w_ref/wg_ref: (E+2H, H)  -- constant index_map: DMA'd once, VMEM-resident
    # b_ref/bg_ref: (1, H) f32
    # o_ref: (TB, H)
    # x_ref: (TB, E+2H) scratch -- staged concat([ne, s1, s2], axis=1)

    # Stage the feature-concat once so each gate is a single K = E+2H MXU pass.
    x_ref[:, 0:emb] = ne_ref[...]
    x_ref[:, emb:emb + hid] = s1_ref[...]
    x_ref[:, emb + hid:emb + 2 * hid] = s2_ref[...]
    x = x_ref[...]

    # Two N=H dots keep the tanh / sigmoid pre-activations in separate,
    # lane-aligned vregs (no XLU lane rotate/select before the h*g multiply).
    acc_h = jnp.dot(x, w_ref[...], preferred_element_type=jnp.float32) + b_ref[...]
    acc_g = jnp.dot(x, wg_ref[...], preferred_element_type=jnp.float32) + bg_ref[...]

    h = jnp.tanh(acc_h)
    g = jax.nn.sigmoid(acc_g)
    o_ref[...] = (h * g).astype(o_ref.dtype)


def prepare_merge_params(params, compute_dtype=jnp.bfloat16):
    """Cast weights to the MXU operand dtype; keep biases f32 (added to f32 acc)."""
    w = params["w"].astype(compute_dtype)                      # (D, H)
    wg = params["wg"].astype(compute_dtype)                    # (D, H)
    b = params["b"].reshape(1, -1).astype(jnp.float32)         # (1, H)
    bg = params["bg"].reshape(1, -1).astype(jnp.float32)       # (1, H)
    return w, wg, b, bg


def merge_forward(node_embedding, sub_tree_1, sub_tree_2, w, wg, b, bg,
                  *, block_b=256, out_dtype=jnp.float32):
    """Pallas implementation of Merge.forward (dropout = identity / eval mode)."""
    B, E = node_embedding.shape
    H = sub_tree_1.shape[1]
    D = E + 2 * H
    assert sub_tree_2.shape == (B, H)
    assert w.shape == (D, H) and wg.shape == (D, H)
    assert b.shape == (1, H) and bg.shape == (1, H)
    # Sublane-alignment guard: the in-kernel staging offsets (E, E+H) are
    # relayout-free only when E and H are multiples of 8.
    assert E % 8 == 0 and H % 8 == 0, "pad embedding/hidden size to a multiple of 8"

    compute_dtype = w.dtype
    ne = node_embedding.astype(compute_dtype)
    s1 = sub_tree_1.astype(compute_dtype)
    s2 = sub_tree_2.astype(compute_dtype)

    # Batch tiling: largest tile <= block_b (multiple of 8); zero-pad batch so
    # the grid covers it exactly.  TODO(synk): for lane-dense output at small H
    # the wrapper could also fold rows into a (B/4, 4H) slab; skipped to keep
    # the module's (B, H) output contract.
    tb = min(block_b, _round_up(B, 8))
    b_pad = _round_up(B, tb)
    if b_pad != B:
        pad = ((0, b_pad - B), (0, 0))
        ne = jnp.pad(ne, pad)
        s1 = jnp.pad(s1, pad)
        s2 = jnp.pad(s2, pad)

    grid = (b_pad // tb,)
    kernel = functools.partial(_merge_kernel, emb=E, hid=H)

    out = pl.pallas_call(
        kernel,
        out_shape=jax.ShapeDtypeStruct((b_pad, H), out_dtype),
        grid=grid,
        in_specs=[
            pl.BlockSpec((tb, E), lambda i: (i, 0)),     # node_embedding tile
            pl.BlockSpec((tb, H), lambda i: (i, 0)),     # sub_tree_1 tile
            pl.BlockSpec((tb, H), lambda i: (i, 0)),     # sub_tree_2 tile
            pl.BlockSpec((D, H), lambda i: (0, 0)),      # W      (resident)
            pl.BlockSpec((D, H), lambda i: (0, 0)),      # W_g    (resident)
            pl.BlockSpec((1, H), lambda i: (0, 0)),      # b      (resident)
            pl.BlockSpec((1, H), lambda i: (0, 0)),      # b_g    (resident)
        ],
        out_specs=pl.BlockSpec((tb, H), lambda i: (i, 0)),
        scratch_shapes=[pltpu.VMEM((tb, D), compute_dtype)],
        compiler_params=pltpu.CompilerParams(
            dimension_semantics=("parallel",)),
    )(ne, s1, s2, w, wg, b, bg)

    return out[:B] if b_pad != B else out


def init_merge_params(key, hidden_size, embedding_size, dtype=jnp.float32):
    d_in = hidden_size * 2 + embedding_size
    k1, k2, k3, k4 = jax.random.split(key, 4)
    bound = 1.0 / (d_in ** 0.5)   # roughly PyTorch Linear default init
    return {
        "w":  jax.random.uniform(k1, (d_in, hidden_size), dtype, -bound, bound),
        "b":  jax.random.uniform(k2, (1, hidden_size), dtype, -bound, bound),
        "wg": jax.random.uniform(k3, (d_in, hidden_size), dtype, -bound, bound),
        "bg": jax.random.uniform(k4, (1, hidden_size), dtype, -bound, bound),
    }


def _reference(node_embedding, sub_tree_1, sub_tree_2, params,
               compute_dtype=jnp.bfloat16):
    """Reference with the same bf16-operand / f32-accumulate numerics."""
    x = jnp.concatenate([node_embedding, sub_tree_1, sub_tree_2],
                        axis=1).astype(compute_dtype)
    w = params["w"].astype(compute_dtype)
    wg = params["wg"].astype(compute_dtype)
    h = jnp.tanh(jnp.dot(x, w, preferred_element_type=jnp.float32)
                 + params["b"].astype(jnp.float32))
    g = jax.nn.sigmoid(jnp.dot(x, wg, preferred_element_type=jnp.float32)
                       + params["bg"].astype(jnp.float32))
    return h * g


if __name__ == "__main__":
    hidden_size = 32
    embedding_size = 32
    batch = 8

    key = jax.random.PRNGKey(0)
    kp, k1, k2, k3 = jax.random.split(key, 4)

    params = init_merge_params(kp, hidden_size, embedding_size)
    w, wg, b, bg = prepare_merge_params(params)   # bf16 weights, f32 biases

    node_embedding = jax.random.normal(k1, (batch, embedding_size), jnp.float32)
    sub_tree_1 = jax.random.normal(k2, (batch, hidden_size), jnp.float32)
    sub_tree_2 = jax.random.normal(k3, (batch, hidden_size), jnp.float32)

    out = merge_forward(node_embedding, sub_tree_1, sub_tree_2, w, wg, b, bg)
    out = jax.block_until_ready(out)

    ref = _reference(node_embedding, sub_tree_1, sub_tree_2, params)
    assert out.shape == (batch, hidden_size)
    assert bool(jnp.all(jnp.isfinite(out)))
    # bf16 MXU operands -> relaxed tolerance vs the bf16-cast reference.
    assert jnp.allclose(out, ref, atol=1e-2, rtol=1e-2), "mismatch vs reference"

    print("KERNEL_OK")
</pallas_src>

<mosaic_0001>
module attributes {stable_mosaic.version = 11 : i64} {
  func.func @_merge_kernel(%arg0: i32, %arg1: memref<8x32xbf16, #tpu.memory_space<vmem>>, %arg2: memref<8x32xbf16, #tpu.memory_space<vmem>>, %arg3: memref<8x32xbf16, #tpu.memory_space<vmem>>, %arg4: memref<96x32xbf16, #tpu.memory_space<vmem>>, %arg5: memref<96x32xbf16, #tpu.memory_space<vmem>>, %arg6: memref<1x32xf32, #tpu.memory_space<vmem>>, %arg7: memref<1x32xf32, #tpu.memory_space<vmem>>, %arg8: memref<8x32xf32, #tpu.memory_space<vmem>>, %arg9: memref<8x96xbf16, #tpu.memory_space<vmem>>) attributes {dimension_semantics = [#tpu.dimension_semantics<parallel>], iteration_bounds = array<i64: 1>, scalar_prefetch = 0 : i64, scratch_operands = 1 : i64, tpu.core_type = #tpu.core_type<tc>, window_params = [{transform_indices = @transform_0, window_bounds = array<i64: 8, 32>}, {transform_indices = @transform_1, window_bounds = array<i64: 8, 32>}, {transform_indices = @transform_2, window_bounds = array<i64: 8, 32>}, {pipeline_mode = #tpu.pipeline_mode<synchronous>, transform_indices = @transform_3, window_bounds = array<i64: 96, 32>}, {pipeline_mode = #tpu.pipeline_mode<synchronous>, transform_indices = @transform_4, window_bounds = array<i64: 96, 32>}, {pipeline_mode = #tpu.pipeline_mode<synchronous>, transform_indices = @transform_5, window_bounds = array<i64: 1, 32>}, {pipeline_mode = #tpu.pipeline_mode<synchronous>, transform_indices = @transform_6, window_bounds = array<i64: 1, 32>}, {transform_indices = @transform_7, window_bounds = array<i64: 8, 32>}]} {
    %c0 = arith.constant 0 : index
    %c0_0 = arith.constant 0 : index
    %0 = vector.load %arg1[%c0, %c0_0] : memref<8x32xbf16, #tpu.memory_space<vmem>>, vector<8x32xbf16>
    %c0_1 = arith.constant 0 : index
    %c0_2 = arith.constant 0 : index
    %1 = vector.load %arg9[%c0_1, %c0_2] : memref<8x96xbf16, #tpu.memory_space<vmem>>, vector<8x32xbf16>
    tpu.vector_store %arg9[%c0_1, %c0_2], %0 {strides = array<i32>} : memref<8x96xbf16, #tpu.memory_space<vmem>>, vector<8x32xbf16>,
    %c0_3 = arith.constant 0 : index
    %c0_4 = arith.constant 0 : index
    %2 = vector.load %arg2[%c0_3, %c0_4] : memref<8x32xbf16, #tpu.memory_space<vmem>>, vector<8x32xbf16>
    %c0_5 = arith.constant 0 : index
    %c32 = arith.constant 32 : index
    %3 = vector.load %arg9[%c0_5, %c32] : memref<8x96xbf16, #tpu.memory_space<vmem>>, vector<8x32xbf16>
    tpu.vector_store %arg9[%c0_5, %c32], %2 {strides = array<i32>} : memref<8x96xbf16, #tpu.memory_space<vmem>>, vector<8x32xbf16>,
    %c0_6 = arith.constant 0 : index
    %c0_7 = arith.constant 0 : index
    %4 = vector.load %arg3[%c0_6, %c0_7] : memref<8x32xbf16, #tpu.memory_space<vmem>>, vector<8x32xbf16>
    %c0_8 = arith.constant 0 : index
    %c64 = arith.constant 64 : index
    %5 = vector.load %arg9[%c0_8, %c64] : memref<8x96xbf16, #tpu.memory_space<vmem>>, vector<8x32xbf16>
    tpu.vector_store %arg9[%c0_8, %c64], %4 {strides = array<i32>} : memref<8x96xbf16, #tpu.memory_space<vmem>>, vector<8x32xbf16>,
    %c0_9 = arith.constant 0 : index
    %c0_10 = arith.constant 0 : index
    %6 = vector.load %arg9[%c0_9, %c0_10] : memref<8x96xbf16, #tpu.memory_space<vmem>>, vector<8x96xbf16>
    %c0_11 = arith.constant 0 : index
    %c0_12 = arith.constant 0 : index
    %7 = vector.load %arg4[%c0_11, %c0_12] : memref<96x32xbf16, #tpu.memory_space<vmem>>, vector<96x32xbf16>
    %cst = arith.constant dense<0.000000e+00> : vector<8x32xf32>
    %8 = tpu.matmul %6, %7, %cst {dimension_numbers = #tpu.dot_dimension_numbers<[1], [0], [0], [1], [0, 0, 1, 1], [], []>} : vector<8x96xbf16>, vector<96x32xbf16>, vector<8x32xf32> -> vector<8x32xf32>
    %c0_13 = arith.constant 0 : index
    %c0_14 = arith.constant 0 : index
    %9 = vector.load %arg6[%c0_13, %c0_14] : memref<1x32xf32, #tpu.memory_space<vmem>>, vector<1x32xf32>
    %10 = vector.broadcast %9 : vector<1x32xf32> to vector<8x32xf32>
    %11 = arith.addf %8, %10 : vector<8x32xf32>
    %c0_15 = arith.constant 0 : index
    %c0_16 = arith.constant 0 : index
    %12 = vector.load %arg5[%c0_15, %c0_16] : memref<96x32xbf16, #tpu.memory_space<vmem>>, vector<96x32xbf16>
    %cst_17 = arith.constant dense<0.000000e+00> : vector<8x32xf32>
    %13 = tpu.matmul %6, %12, %cst_17 {dimension_numbers = #tpu.dot_dimension_numbers<[1], [0], [0], [1], [0, 0, 1, 1], [], []>} : vector<8x96xbf16>, vector<96x32xbf16>, vector<8x32xf32> -> vector<8x32xf32>
    %c0_18 = arith.constant 0 : index
    %c0_19 = arith.constant 0 : index
    %14 = vector.load %arg7[%c0_18, %c0_19] : memref<1x32xf32, #tpu.memory_space<vmem>>, vector<1x32xf32>
    %15 = vector.broadcast %14 : vector<1x32xf32> to vector<8x32xf32>
    %16 = arith.addf %13, %15 : vector<8x32xf32>
    %17 = math.tanh %11 : vector<8x32xf32>
    %18 = arith.negf %16 : vector<8x32xf32>
    %19 = math.exp %18 : vector<8x32xf32>
    %cst_20 = arith.constant 1.000000e+00 : f32
    %20 = vector.broadcast %cst_20 : f32 to vector<8x32xf32>
    %21 = arith.addf %20, %19 : vector<8x32xf32>
    %22 = arith.divf %20, %21 : vector<8x32xf32>
    %23 = arith.mulf %17, %22 : vector<8x32xf32>
    %c0_21 = arith.constant 0 : index
    %c0_22 = arith.constant 0 : index
    %24 = vector.load %arg8[%c0_21, %c0_22] : memref<8x32xf32, #tpu.memory_space<vmem>>, vector<8x32xf32>
    tpu.vector_store %arg8[%c0_21, %c0_22], %23 {strides = array<i32>} : memref<8x32xf32, #tpu.memory_space<vmem>>, vector<8x32xf32>,
    return
  }
  func.func @transform_0(%arg0: i32) -> (i32, i32) {
    %c0_i32 = arith.constant 0 : i32
    %c0_i32_0 = arith.constant 0 : i32
    return %arg0, %c0_i32 : i32, i32
  }
  func.func @transform_1(%arg0: i32) -> (i32, i32) {
    %c0_i32 = arith.constant 0 : i32
    %c0_i32_0 = arith.constant 0 : i32
    return %arg0, %c0_i32 : i32, i32
  }
  func.func @transform_2(%arg0: i32) -> (i32, i32) {
    %c0_i32 = arith.constant 0 : i32
    %c0_i32_0 = arith.constant 0 : i32
    return %arg0, %c0_i32 : i32, i32
  }
  func.func @transform_3(%arg0: i32) -> (i32, i32) {
    %c0_i32 = arith.constant 0 : i32
    %c0_i32_0 = arith.constant 0 : i32
    %c0_i32_1 = arith.constant 0 : i32
    return %c0_i32, %c0_i32_0 : i32, i32
  }
  func.func @transform_4(%arg0: i32) -> (i32, i32) {
    %c0_i32 = arith.constant 0 : i32
    %c0_i32_0 = arith.constant 0 : i32
    %c0_i32_1 = arith.constant 0 : i32
    return %c0_i32, %c0_i32_0 : i32, i32
  }
  func.func @transform_5(%arg0: i32) -> (i32, i32) {
    %c0_i32 = arith.constant 0 : i32
    %c0_i32_0 = arith.constant 0 : i32
    %c0_i32_1 = arith.constant 0 : i32
    return %c0_i32, %c0_i32_0 : i32, i32
  }
  func.func @transform_6(%arg0: i32) -> (i32, i32) {
    %c0_i32 = arith.constant 0 : i32
    %c0_i32_0 = arith.constant 0 : i32
    %c0_i32_1 = arith.constant 0 : i32
    return %c0_i32, %c0_i32_0 : i32, i32
  }
  func.func @transform_7(%arg0: i32) -> (i32, i32) {
    %c0_i32 = arith.constant 0 : i32
    %c0_i32_0 = arith.constant 0 : i32
    return %arg0, %c0_i32 : i32, i32
  }
}

</mosaic_0001>

<llo_original>
// kernel: tpu_custom_call.1
$region0: #{tpu_custom_call.1}
  #allocation0 [shape = 'u32[]', space=smem, size = 0x4, offset = 0x4, fixed_abs, tag = 'smem constant byte address 0x4 - core index']
  #allocation1 [shape = 'u32[72,128]{1,0:T(1,128)}', space=vmem, size = 0x9000, scoped, tag = 'internal scratch']
  #allocation2 [shape = 'bf16[8,96]{1,0:T(8,128)(2,1)}', space=vmem, size = 0x800, scoped, tag = 'scratch operand']
  %s0 = inlined_call_operand.vmem [shape: bf16[8,32], index: 0, kind: input, shape index: {}]
  %s1 = inlined_call_operand.vmem [shape: bf16[8,32], index: 1, kind: input, shape index: {}]
  %s2 = inlined_call_operand.vmem [shape: bf16[8,32], index: 2, kind: input, shape index: {}]
  %s3 = inlined_call_operand.vmem [shape: bf16[96,32], index: 3, kind: input, shape index: {}]
  %s4 = inlined_call_operand.vmem [shape: bf16[96,32], index: 4, kind: input, shape index: {}]
  %s5 = inlined_call_operand.vmem [shape: f32[1,32], index: 5, kind: input, shape index: {}]
  %s6 = inlined_call_operand.vmem [shape: f32[1,32], index: 6, kind: input, shape index: {}]
  %s7 = inlined_call_operand.hbm [shape: f32[8,32], index: 7, kind: output, shape index: {}]
  %s8 = sld [smem:[#allocation0]]
  $region38: #{tpu_custom_call.1} parent=0
    _
  %s10 = ssub.s32 1, %s8
  %s11 = scalar_select 0, %s10, %s8
  $region1: #{tpu_custom_call.1} parent=0
    #allocation3 [shape = 'u8[4096]{0}', space=vmem, size = 0x1000, scoped, tag = 'output window, operand 0, single buffered']
    #allocation4 [shape = 's32[1]{0}', space=sflag, size = 0x4, scoped, tag = 'scoped memory for tpu_custom_call.1']
    %12 = vsyncpa [#allocation4], 0
    // Predicated region
    $region2: #{tpu_custom_call.1} parent=1 // pred_check
      _
    $region3: #{tpu_custom_call.1} parent=1 // pred_check_branch
      %14 = sbr.rel (0) target = $region5
    $region4: #{tpu_custom_call.1} parent=1 // pred_region
      _
    $region5: #{tpu_custom_call.1} parent=1 // pred_fallthru
      _
    // Predicated region
    $region6: #{tpu_custom_call.1} parent=1 // pred_check
      _
    $region7: #{tpu_custom_call.1} parent=1 // pred_check_branch
      %16 = sbr.rel (0) target = $region9
    $region8: #{tpu_custom_call.1} parent=1 // pred_region
      _
    $region9: #{tpu_custom_call.1} parent=1 // pred_fallthru
      _
    // Predicated region
    $region10: #{tpu_custom_call.1} parent=1 // pred_check
      _
    $region11: #{tpu_custom_call.1} parent=1 // pred_check_branch
      %18 = sbr.rel (0) target = $region13
    $region12: #{tpu_custom_call.1} parent=1 // pred_region
      _
    $region13: #{tpu_custom_call.1} parent=1 // pred_fallthru
      _
    // Predicated region
    $region14: #{tpu_custom_call.1} parent=1 // pred_check
      _
    $region15: #{tpu_custom_call.1} parent=1 // pred_check_branch
      %20 = sbr.rel (0) target = $region17
    $region16: #{tpu_custom_call.1} parent=1 // pred_region
      _
    $region17: #{tpu_custom_call.1} parent=1 // pred_fallthru
      _
    // Predicated region
    $region18: #{tpu_custom_call.1} parent=1 // pred_check
      _
    $region19: #{tpu_custom_call.1} parent=1 // pred_check_branch
      %22 = sbr.rel (0) target = $region21
    $region20: #{tpu_custom_call.1} parent=1 // pred_region
      _
    $region21: #{tpu_custom_call.1} parent=1 // pred_fallthru
      _
    // Predicated region
    $region22: #{tpu_custom_call.1} parent=1 // pred_check
      _
    $region23: #{tpu_custom_call.1} parent=1 // pred_check_branch
      %24 = sbr.rel (0) target = $region25
    $region24: #{tpu_custom_call.1} parent=1 // pred_region
      _
    $region25: #{tpu_custom_call.1} parent=1 // pred_fallthru
      _
    // Predicated region
    $region26: #{tpu_custom_call.1} parent=1 // pred_check
      _
    $region27: #{tpu_custom_call.1} parent=1 // pred_check_branch
      %26 = sbr.rel (0) target = $region29
    $region28: #{tpu_custom_call.1} parent=1 // pred_region
      _
    $region29: #{tpu_custom_call.1} parent=1 // pred_fallthru
      _
    %v28 = vld [vmem:[%s0] sm:$0xf]
    %vm29 = vcmask 257024
    %30 = vst.msk [vmem:[#allocation2] sm:$0xf] %vm29, %v28
    %v31 = vld [vmem:[%s1] sm:$0xf]
    %33 = vrot.lane.b32.xlu0 %v31, 32
    %v34 = vpop.permute.xlu0 %33
    %vm36 = vcmask 519424
    %37 = vst.msk [vmem:[#allocation2] sm:$0xf] %vm36, %v34
    %v38 = vld [vmem:[%s2] sm:$0xf]
    %40 = vrot.lane.b32.xlu0 %v38, 64
    %v41 = vpop.permute.xlu0 %40
    %vm43 = vcmask 781824
    %44 = vst.msk [vmem:[#allocation2] sm:$0xf] %vm43, %v41
    %v45 = vld [vmem:[#allocation2] sm:$0xf]
    %v46 = vld [vmem:[%s3] sm:$0xf]
    %v47 = vld [vmem:[%s3 + $0x4] sm:$0xf]
    %v48 = vld [vmem:[%s3 + $0x8] sm:$0xf]
    %v49 = vld [vmem:[%s3 + $0xc] sm:$0xf]
    %v50 = vld [vmem:[%s3 + $0x10] sm:$0xf]
    %v51 = vld [vmem:[%s3 + $0x14] sm:$0xf]
    %v52 = vld [vmem:[%s3 + $0x18] sm:$0xf]
    %v53 = vld [vmem:[%s3 + $0x1c] sm:$0xf]
    %v54 = vld [vmem:[%s3 + $0x20] sm:$0xf]
    %v55 = vld [vmem:[%s3 + $0x24] sm:$0xf]
    %v56 = vld [vmem:[%s3 + $0x28] sm:$0xf]
    %v57 = vld [vmem:[%s3 + $0x2c] sm:$0xf]
    %v58 = vld [vmem:[%s5] sm:$0x1]
    %v60 = vperm.slane %v58, 0
    %v74 = vunpack.c.l.b16 %v46
    %v75 = vunpack.c.l.b16 %v47
    %v76 = vunpack.c.l.b16 %v48
    %v77 = vunpack.c.l.b16 %v49
    %v78 = vunpack.c.l.b16 %v50
    %v79 = vunpack.c.l.b16 %v51
    %v80 = vunpack.c.l.b16 %v52
    %v81 = vunpack.c.l.b16 %v53
    %v82 = vunpack.c.l.b16 %v54
    %v83 = vunpack.c.l.b16 %v55
    %v84 = vunpack.c.l.b16 %v56
    %v85 = vunpack.c.l.b16 %v57
    %v86 = vpack.c.b16 %v75, %v74
    %v87 = vpack.c.b16 %v77, %v76
    %v88 = vpack.c.b16 %v79, %v78
    %v89 = vpack.c.b16 %v81, %v80
    %v90 = vpack.c.b16 %v83, %v82
    %v91 = vpack.c.b16 %v85, %v84
    %vm98 = vcmask 785408
    %v100 = vsel %vm98, %v45, 0
    %102 = vmatpush.bf16.msra.mxu0 0
    %103 = vmatpush.bf16.msra.mxu0 0
    %104 = vmatpush.bf16.msra.mxu0 %v91
    %105 = vmatpush.bf16.msra.mxu0 %v90
    %106 = vmatpush.bf16.msra.mxu0 %v89
    %107 = vmatpush.bf16.msra.mxu0 %v88
    %108 = vmatpush.bf16.msra.mxu0 %v87
    %109 = vmatpush.bf16.msra.mxu0 %v86
    %110 = vmatmul.bf16.gmra.mxu0 %v100
    %v111 = vpop.f32.mrf.mxu0
    %v112 = vadd.f32 %v60, %v111
    %v113 = vpop.f32.mrf.mxu0
    %114 = vdwg.mxu0
    %v115 = vld [vmem:[%s4] sm:$0xf]
    %v116 = vld [vmem:[%s4 + $0x4] sm:$0xf]
    %v117 = vld [vmem:[%s4 + $0x8] sm:$0xf]
    %v118 = vld [vmem:[%s4 + $0xc] sm:$0xf]
    %v119 = vld [vmem:[%s4 + $0x10] sm:$0xf]
    %v120 = vld [vmem:[%s4 + $0x14] sm:$0xf]
    %v121 = vld [vmem:[%s4 + $0x18] sm:$0xf]
    %v122 = vld [vmem:[%s4 + $0x1c] sm:$0xf]
    %v123 = vld [vmem:[%s4 + $0x20] sm:$0xf]
    %v124 = vld [vmem:[%s4 + $0x24] sm:$0xf]
    %v125 = vld [vmem:[%s4 + $0x28] sm:$0xf]
    %v126 = vld [vmem:[%s4 + $0x2c] sm:$0xf]
    %v127 = vld [vmem:[%s6] sm:$0x1]
    %v129 = vperm.slane %v127, 0
    %v143 = vunpack.c.l.b16 %v115
    %v144 = vunpack.c.l.b16 %v116
    %v145 = vunpack.c.l.b16 %v117
    %v146 = vunpack.c.l.b16 %v118
    %v147 = vunpack.c.l.b16 %v119
    %v148 = vunpack.c.l.b16 %v120
    %v149 = vunpack.c.l.b16 %v121
    %v150 = vunpack.c.l.b16 %v122
    %v151 = vunpack.c.l.b16 %v123
    %v152 = vunpack.c.l.b16 %v124
    %v153 = vunpack.c.l.b16 %v125
    %v154 = vunpack.c.l.b16 %v126
    %v155 = vpack.c.b16 %v144, %v143
    %v156 = vpack.c.b16 %v146, %v145
    %v157 = vpack.c.b16 %v148, %v147
    %v158 = vpack.c.b16 %v150, %v149
    %v159 = vpack.c.b16 %v152, %v151
    %v160 = vpack.c.b16 %v154, %v153
    %167 = vmatpush.bf16.msra.mxu0 0
    %168 = vmatpush.bf16.msra.mxu0 0
    %169 = vmatpush.bf16.msra.mxu0 %v160
    %170 = vmatpush.bf16.msra.mxu0 %v159
    %171 = vmatpush.bf16.msra.mxu0 %v158
    %172 = vmatpush.bf16.msra.mxu0 %v157
    %173 = vmatpush.bf16.msra.mxu0 %v156
    %174 = vmatpush.bf16.msra.mxu0 %v155
    %175 = vmatmul.bf16.gmra.mxu0 %v100
    %v176 = vpop.f32.mrf.mxu0
    %v177 = vadd.f32 %v129, %v176
    %v178 = vpop.f32.mrf.mxu0
    %179 = vdwg.mxu0
    %v180 = vtanh.pop %v112
    %v181 = vxor.u32 %v177, 2147483648
    %v182 = vmul.f32 %v181, 1.442695
    %v183 = vpow.pop %v182
    %v184 = vadd.f32 %v183, 1.0
    %v185 = vrcp.pop %v184
    %v186 = vmul.f32 %v184, %v185
    %v187 = vsub.f32 1.0, %v186
    %v188 = vmul.f32 %v185, %v187
    %v189 = vadd.f32 %v185, %v188
    %vm190 = vweird.f32 %v184
    %vm191 = vweird.f32 %v185
    %vm192 = vmor %vm190, %vm191
    %v193 = vsel %vm192, %v185, %v189
    %v194 = vand.u32 2147483647, %v184
    %vm195 = vcmp.eq.f32.partialorder %v194, 8.507059e+37
    %v196 = vand.u32 %v184, 2147483648
    %v197 = vor.u32 1.1754944e-38, %v196
    %v198 = vsel %vm195, %v197, %v193
    %v199 = vmul.f32 1.0, %v198
    %v200 = vmul.f32 %v180, %v199
    %vm201 = vcmask 261120
    %202 = vst.msk [vmem:[#allocation3] sm:$0xff] %vm201, %v200
    // Predicated region
    $region30: #{tpu_custom_call.1} parent=1 // pred_check
      _
    $region31: #{tpu_custom_call.1} parent=1 // pred_check_branch
      %204 = sbr.rel (0) target = $region33
    $region32: #{tpu_custom_call.1} parent=1 // pred_region
      %206 = vsyncadd [#allocation4], 0
      %s208 = sshll.u32 [#allocation3], 4
      %s209 = int_to_ptr.vmem [resolvable:$true] %s208
      %s210 = sshll.u32 %s7, 4
      %s211 = int_to_ptr.hbm [resolvable:$true] %s210
      %213 = dma.vmem_to_hbm [thread:$0]  %s209, 128, %s211, [#allocation4]
    $region33: #{tpu_custom_call.1} parent=1 // pred_fallthru
      _
    // Predicated region
    $region34: #{tpu_custom_call.1} parent=1 // pred_check
      _
    $region35: #{tpu_custom_call.1} parent=1 // pred_check_branch
      %215 = sbr.rel (0) target = $region37
    $region36: #{tpu_custom_call.1} parent=1 // pred_region
      %217 = dma.done [#allocation4], 128
    $region37: #{tpu_custom_call.1} parent=1 // pred_fallthru
      _
    %218 = vsyncpa [#allocation4], 1

</llo_original>
